<compile_context>
chip_gen: v6e
topology: v6e:2x2x1
jax: 0.10.0
libtpu: 0.0.40
codegen_flags: <defaults>
</compile_context>

<pallas_src>
import jax
import jax.numpy as jnp
from jax.experimental import pallas as pl
from jax.experimental.pallas import tpu as pltpu


def _round_up(x, m):
    return ((x + m - 1) // m) * m


def _make_kernel(b_blk, t_blk, D, eps_denom=1e-8, eps_ln=1e-5):
    def kernel(c_ref, v_ref, w_ref, dw_ref, lnw_ref, lnb_ref, db_ref,
               out_ref, a_ref, b_ref):
        # Reset the recurrent carry at the start of each batch-block's sweep.
        @pl.when(pl.program_id(1) == 0)
        def _():
            a_ref[...] = jnp.zeros_like(a_ref)
            b_ref[...] = jnp.zeros_like(b_ref)

        C = c_ref[...].astype(jnp.float32)          # (b_blk, T, D)
        V = v_ref[...].astype(jnp.float32)
        W = w_ref[...].astype(jnp.float32)
        dw = dw_ref[...].astype(jnp.float32)        # (1, 1, D)
        lnw = lnw_ref[...].astype(jnp.float32)      # (1, 1, D)
        lnb = lnb_ref[...].astype(jnp.float32)      # (1, 1, D)
        db = db_ref[0]                              # scalar (SMEM)

        # ---- block-vectorized, recurrence-free math (full-tile VPU/EUP) ----
        logits = jnp.sum(W * dw, axis=-1, keepdims=True) + db      # (b, T, 1)
        # log(sigmoid(x)) = -softplus(-x), numerically stable.
        neg = -logits
        softplus = jnp.where(neg > 20.0, neg,
                             jnp.log(1.0 + jnp.exp(jnp.minimum(neg, 20.0))))
        logd = -softplus                                           # (b, T, 1)
        expC = jnp.exp(C)                                          # (b, T, D)
        s = jnp.sum(expC, axis=-1, keepdims=True)                  # (b, T, 1)
        U = expC * V                                               # (b, T, D)

        # ---- chunked parallel scan on the MXU ----
        # M[t, k] = prod_{k<j<=t} decay_j = exp(A[t, k]),  A[t,k] <= 0.
        ri = jax.lax.broadcasted_iota(jnp.int32, (t_blk, t_blk), 0)  # row = t/j
        ci = jax.lax.broadcasted_iota(jnp.int32, (t_blk, t_blk), 1)  # col = j/k
        lower = (ci <= ri).astype(jnp.float32)                       # [col <= row]
        strict = (ri > ci).astype(jnp.float32)                       # [row >  col]
        Lb = jnp.broadcast_to(lower, (b_blk, t_blk, t_blk))

        # R[b, j, k] = log d_j * [j > k];  A[b, t, k] = sum_{k<j<=t} log d_j
        R = jnp.broadcast_to(logd, (b_blk, t_blk, t_blk)) * strict
        A = jnp.einsum('btj,bjk->btk', Lb, R,
                       preferred_element_type=jnp.float32)
        M = jnp.exp(A) * lower                                       # (b, T, T)

        # log P_t = sum_{j<=t} log d_j = A[t, 0] + log d_0.
        logP = A[:, :, 0:1] + logd[:, 0:1, :]                        # (b, T, 1)
        P = jnp.exp(logP)

        a_in = a_ref[...]                                            # (b, 1, 1)
        b_in = b_ref[...]                                            # (b, 1, D)
        a_all = jnp.einsum('btk,bkx->btx', M, s,
                           preferred_element_type=jnp.float32) + P * a_in
        b_all = jnp.einsum('btk,bkd->btd', M, U,
                           preferred_element_type=jnp.float32) + P * b_in

        # ---- epilogue: divide + LayerNorm on the whole block ----
        # approx reciprocal error is a common scale across D -> cancels in LN.
        out = b_all * pl.reciprocal(a_all + eps_denom, approx=True)
        mean = jnp.mean(out, axis=-1, keepdims=True)
        cen = out - mean
        var = jnp.mean(cen * cen, axis=-1, keepdims=True)
        out_ref[...] = (cen * jax.lax.rsqrt(var + eps_ln) * lnw
                        + lnb).astype(out_ref.dtype)

        # Carry the state of this block's last timestep forward.
        a_ref[...] = a_all[:, t_blk - 1:t_blk, :]
        b_ref[...] = b_all[:, t_blk - 1:t_blk, :]

    return kernel


def sequence_merging_seq(C, V, W, decay_w, decay_b, ln_w, ln_b, *,
                         max_t_blk=128, batch_block=None,
                         vmem_limit_bytes=48 * 1024 * 1024):
    """C, V, W: (B, S, D). Returns (B, S, D) matching the PyTorch module."""
    B, S, D = C.shape

    t_blk = min(_round_up(max_t_blk, 8), _round_up(S, 8))
    s_pad = _round_up(S, t_blk)
    b_blk = B
    if batch_block is not None and B % batch_block == 0:
        b_blk = batch_block

    if s_pad != S:
        pad = [(0, 0), (0, s_pad - S), (0, 0)]
        C, V, W = (jnp.pad(x, pad) for x in (C, V, W))

    dw3 = decay_w.reshape(1, 1, D)
    lnw3 = ln_w.reshape(1, 1, D)
    lnb3 = ln_b.reshape(1, 1, D)
    db1 = decay_b.reshape(1).astype(jnp.float32)

    grid = (B // b_blk, s_pad // t_blk)
    step_spec = pl.BlockSpec((b_blk, t_blk, D), lambda b, s: (b, s, 0))
    param_spec = pl.BlockSpec((1, 1, D), lambda b, s: (0, 0, 0))
    smem_spec = pl.BlockSpec(memory_space=pltpu.MemorySpace.SMEM)

    cost = pl.CostEstimate(
        flops=2 * B * s_pad * t_blk * (t_blk + D + 3) + 12 * B * s_pad * D,
        transcendentals=B * s_pad * (D + 4),
        bytes_accessed=4 * B * s_pad * D * C.dtype.itemsize,
    )

    out = pl.pallas_call(
        _make_kernel(b_blk, t_blk, D),
        out_shape=jax.ShapeDtypeStruct((B, s_pad, D), C.dtype),
        grid=grid,
        in_specs=[step_spec, step_spec, step_spec,
                  param_spec, param_spec, param_spec, smem_spec],
        out_specs=step_spec,
        scratch_shapes=[pltpu.VMEM((b_blk, 1, 1), jnp.float32),
                        pltpu.VMEM((b_blk, 1, D), jnp.float32)],
        compiler_params=pltpu.CompilerParams(
            dimension_semantics=("parallel", "arbitrary"),
            vmem_limit_bytes=vmem_limit_bytes),
        cost_estimate=cost,
    )(C, V, W, dw3, lnw3, lnb3, db1)

    return out[:, :S, :] if s_pad != S else out


def _reference(C, V, W, decay_w, decay_b, ln_w, ln_b):
    """Pure-JAX reference mirroring the PyTorch loop."""
    B, S, D = C.shape
    a = jnp.zeros((B, 1), jnp.float32)
    b = jnp.zeros((B, D), jnp.float32)
    outs = []
    for t in range(S):
        C_t, V_t, W_t = C[:, t, :], V[:, t, :], W[:, t, :]
        decay = jax.nn.sigmoid(W_t @ decay_w.reshape(D, 1) + decay_b)
        eC = jnp.exp(C_t)
        a = decay * a + eC.sum(axis=1, keepdims=True)
        b = decay * b + eC * V_t
        outs.append(b / (a + 1e-8))
    res = jnp.stack(outs, axis=1)
    mean = res.mean(axis=-1, keepdims=True)
    var = ((res - mean) ** 2).mean(axis=-1, keepdims=True)
    return (res - mean) * jax.lax.rsqrt(var + 1e-5) * ln_w + ln_b


if __name__ == "__main__":
    def _run_case(key, B, S, D, **kw):
        kC, kV, kW, kdw, kdb, klw, klb = jax.random.split(key, 7)
        C = jax.random.normal(kC, (B, S, D), jnp.float32) * 0.5
        V = jax.random.normal(kV, (B, S, D), jnp.float32)
        W = jax.random.normal(kW, (B, S, D), jnp.float32)
        bound = 1.0 / float(jnp.sqrt(D))
        decay_w = jax.random.uniform(kdw, (1, D), jnp.float32, -bound, bound)
        decay_b = jax.random.uniform(kdb, (1,), jnp.float32, -bound, bound)
        ln_w = jax.random.uniform(klw, (D,), jnp.float32, 0.5, 1.5)
        ln_b = jax.random.normal(klb, (D,), jnp.float32) * 0.1

        out = jax.block_until_ready(
            sequence_merging_seq(C, V, W, decay_w, decay_b, ln_w, ln_b, **kw))
        ref = _reference(C, V, W, decay_w, decay_b, ln_w, ln_b)
        assert out.shape == (B, S, D)
        # Tolerance allows for the MXU scan's different summation order and
        # the exp/log round-trip in the cumulative-decay products.
        err = jnp.max(jnp.abs(out - ref))
        assert jnp.allclose(out, ref, atol=2e-3, rtol=2e-3), f"max err {err}"

    key = jax.random.PRNGKey(0)
    k1, k2 = jax.random.split(key)

    # Small demo shape: single block, single batch block.
    _run_case(k1, B=2, S=8, D=32)
    # Multi-block case: 2 "parallel" batch blocks x 4 sequence blocks,
    # exercises cross-block carries and tail padding (S=52 -> pad to 64).
    _run_case(k2, B=2, S=52, D=32, max_t_blk=16, batch_block=1)

    print("KERNEL_OK")
</pallas_src>

<mosaic_0001>
module attributes {stable_mosaic.version = 11 : i64} {
  func.func @kernel(%arg0: i32, %arg1: i32, %arg2: memref<2x8x32xf32, #tpu.memory_space<vmem>>, %arg3: memref<2x8x32xf32, #tpu.memory_space<vmem>>, %arg4: memref<2x8x32xf32, #tpu.memory_space<vmem>>, %arg5: memref<1x1x32xf32, #tpu.memory_space<vmem>>, %arg6: memref<1x1x32xf32, #tpu.memory_space<vmem>>, %arg7: memref<1x1x32xf32, #tpu.memory_space<vmem>>, %arg8: memref<1xf32, #tpu.memory_space<smem>>, %arg9: memref<2x8x32xf32, #tpu.memory_space<vmem>>, %arg10: memref<2x1x1xf32, #tpu.memory_space<vmem>>, %arg11: memref<2x1x32xf32, #tpu.memory_space<vmem>>) attributes {dimension_semantics = [#tpu.dimension_semantics<parallel>, #tpu.dimension_semantics<arbitrary>], iteration_bounds = array<i64: 1, 1>, scalar_prefetch = 0 : i64, scratch_operands = 2 : i64, tpu.core_type = #tpu.core_type<tc>, window_params = [{transform_indices = @transform_0, window_bounds = array<i64: 2, 8, 32>}, {transform_indices = @transform_1, window_bounds = array<i64: 2, 8, 32>}, {transform_indices = @transform_2, window_bounds = array<i64: 2, 8, 32>}, {pipeline_mode = #tpu.pipeline_mode<synchronous>, transform_indices = @transform_3, window_bounds = array<i64: 1, 1, 32>}, {pipeline_mode = #tpu.pipeline_mode<synchronous>, transform_indices = @transform_4, window_bounds = array<i64: 1, 1, 32>}, {pipeline_mode = #tpu.pipeline_mode<synchronous>, transform_indices = @transform_5, window_bounds = array<i64: 1, 1, 32>}, {transform_indices = @transform_6, window_bounds = array<i64: 1>}, {transform_indices = @transform_7, window_bounds = array<i64: 2, 8, 32>}]} {
    %c0_i32 = arith.constant 0 : i32
    %0 = arith.cmpi eq, %arg1, %c0_i32 : i32
    %1 = arith.extui %0 : i1 to i32
    %c0_i32_0 = arith.constant 0 : i32
    %2 = arith.cmpi ne, %1, %c0_i32_0 : i32
    scf.if %2 {
      %cst_49 = arith.constant 0.000000e+00 : f32
      %99 = vector.broadcast %cst_49 : f32 to vector<2x1x1xf32>
      %c0_50 = arith.constant 0 : index
      %c0_51 = arith.constant 0 : index
      %c0_52 = arith.constant 0 : index
      %100 = vector.load %arg10[%c0_50, %c0_51, %c0_52] : memref<2x1x1xf32, #tpu.memory_space<vmem>>, vector<2x1x1xf32>
      tpu.vector_store %arg10[%c0_50, %c0_51, %c0_52], %99 {strides = array<i32>} : memref<2x1x1xf32, #tpu.memory_space<vmem>>, vector<2x1x1xf32>,
      %cst_53 = arith.constant 0.000000e+00 : f32
      %101 = vector.broadcast %cst_53 : f32 to vector<2x1x32xf32>
      %c0_54 = arith.constant 0 : index
      %c0_55 = arith.constant 0 : index
      %c0_56 = arith.constant 0 : index
      %102 = vector.load %arg11[%c0_54, %c0_55, %c0_56] : memref<2x1x32xf32, #tpu.memory_space<vmem>>, vector<2x1x32xf32>
      tpu.vector_store %arg11[%c0_54, %c0_55, %c0_56], %101 {strides = array<i32>} : memref<2x1x32xf32, #tpu.memory_space<vmem>>, vector<2x1x32xf32>,
    } else {
    }
    %c0 = arith.constant 0 : index
    %c0_1 = arith.constant 0 : index
    %c0_2 = arith.constant 0 : index
    %3 = vector.load %arg2[%c0, %c0_1, %c0_2] : memref<2x8x32xf32, #tpu.memory_space<vmem>>, vector<2x8x32xf32>
    %c0_3 = arith.constant 0 : index
    %c0_4 = arith.constant 0 : index
    %c0_5 = arith.constant 0 : index
    %4 = vector.load %arg3[%c0_3, %c0_4, %c0_5] : memref<2x8x32xf32, #tpu.memory_space<vmem>>, vector<2x8x32xf32>
    %c0_6 = arith.constant 0 : index
    %c0_7 = arith.constant 0 : index
    %c0_8 = arith.constant 0 : index
    %5 = vector.load %arg4[%c0_6, %c0_7, %c0_8] : memref<2x8x32xf32, #tpu.memory_space<vmem>>, vector<2x8x32xf32>
    %c0_9 = arith.constant 0 : index
    %c0_10 = arith.constant 0 : index
    %c0_11 = arith.constant 0 : index
    %6 = vector.load %arg5[%c0_9, %c0_10, %c0_11] : memref<1x1x32xf32, #tpu.memory_space<vmem>>, vector<1x1x32xf32>
    %c0_12 = arith.constant 0 : index
    %c0_13 = arith.constant 0 : index
    %c0_14 = arith.constant 0 : index
    %7 = vector.load %arg6[%c0_12, %c0_13, %c0_14] : memref<1x1x32xf32, #tpu.memory_space<vmem>>, vector<1x1x32xf32>
    %c0_15 = arith.constant 0 : index
    %c0_16 = arith.constant 0 : index
    %c0_17 = arith.constant 0 : index
    %8 = vector.load %arg7[%c0_15, %c0_16, %c0_17] : memref<1x1x32xf32, #tpu.memory_space<vmem>>, vector<1x1x32xf32>
    %c0_18 = arith.constant 0 : index
    %9 = memref.load %arg8[%c0_18] : memref<1xf32, #tpu.memory_space<smem>>
    %10 = vector.broadcast %6 : vector<1x1x32xf32> to vector<2x8x32xf32>
    %11 = arith.mulf %5, %10 : vector<2x8x32xf32>
    %cst = arith.constant dense<0.000000e+00> : vector<2x8xf32>
    %12 = vector.multi_reduction <add>, %11, %cst [2] : vector<2x8x32xf32> to vector<2x8xf32>
    %13 = vector.shape_cast %12 : vector<2x8xf32> to vector<2x8x1xf32>
    %14 = vector.broadcast %9 : f32 to vector<2x8x1xf32>
    %15 = arith.addf %13, %14 : vector<2x8x1xf32>
    %cst_19 = arith.constant 0.000000e+00 : f32
    %16 = vector.broadcast %cst_19 : f32 to vector<2x8x1xf32>
    %17 = arith.subf %16, %15 : vector<2x8x1xf32>
    %cst_20 = arith.constant 2.000000e+01 : f32
    %18 = vector.broadcast %cst_20 : f32 to vector<2x8x1xf32>
    %19 = arith.cmpf ogt, %17, %18 : vector<2x8x1xf32>
    %cst_21 = arith.constant 2.000000e+01 : f32
    %20 = vector.broadcast %cst_21 : f32 to vector<2x8x1xf32>
    %21 = arith.minimumf %17, %20 : vector<2x8x1xf32>
    %22 = math.exp %21 : vector<2x8x1xf32>
    %cst_22 = arith.constant 1.000000e+00 : f32
    %23 = vector.broadcast %cst_22 : f32 to vector<2x8x1xf32>
    %24 = arith.addf %23, %22 : vector<2x8x1xf32>
    %25 = math.log %24 : vector<2x8x1xf32>
    %26 = arith.select %19, %17, %25 : vector<2x8x1xi1>, vector<2x8x1xf32>
    %cst_23 = arith.constant 0.000000e+00 : f32
    %27 = vector.broadcast %cst_23 : f32 to vector<2x8x1xf32>
    %28 = arith.subf %27, %26 : vector<2x8x1xf32>
    %29 = math.exp %3 : vector<2x8x32xf32>
    %cst_24 = arith.constant dense<0.000000e+00> : vector<2x8xf32>
    %30 = vector.multi_reduction <add>, %29, %cst_24 [2] : vector<2x8x32xf32> to vector<2x8xf32>
    %31 = vector.shape_cast %30 : vector<2x8xf32> to vector<2x8x1xf32>
    %32 = arith.mulf %29, %4 : vector<2x8x32xf32>
    %33 = tpu.iota {dimensions = array<i32: 0>} : vector<8x8xi32>
    %34 = tpu.iota {dimensions = array<i32: 1>} : vector<8x8xi32>
    %35 = arith.cmpi sle, %34, %33 : vector<8x8xi32>
    %36 = arith.extui %35 : vector<8x8xi1> to vector<8x8xi32>
    %37 = arith.sitofp %36 : vector<8x8xi32> to vector<8x8xf32>
    %38 = arith.cmpi sgt, %33, %34 : vector<8x8xi32>
    %39 = arith.extui %38 : vector<8x8xi1> to vector<8x8xi32>
    %40 = arith.sitofp %39 : vector<8x8xi32> to vector<8x8xf32>
    %41 = vector.shape_cast %37 : vector<8x8xf32> to vector<1x8x8xf32>
    %42 = vector.broadcast %41 : vector<1x8x8xf32> to vector<2x8x8xf32>
    %43 = vector.shape_cast %28 : vector<2x8x1xf32> to vector<2x8x1xf32>
    %44 = vector.broadcast %43 : vector<2x8x1xf32> to vector<2x8x8xf32>
    %45 = vector.shape_cast %40 : vector<8x8xf32> to vector<1x8x8xf32>
    %46 = vector.broadcast %45 : vector<1x8x8xf32> to vector<2x8x8xf32>
    %47 = arith.mulf %44, %46 : vector<2x8x8xf32>
    "tpu.trace_start"() <{level = 10 : i32, message = "btj,bjk->btk"}> : () -> ()
    %cst_25 = arith.constant dense<0.000000e+00> : vector<2x8x8xf32>
    %48 = tpu.matmul %42, %47, %cst_25 {dimension_numbers = #tpu.dot_dimension_numbers<[2], [1], [1], [2], [0, 0, 0, 1, 1, 2], [0], [0]>} : vector<2x8x8xf32>, vector<2x8x8xf32>, vector<2x8x8xf32> -> vector<2x8x8xf32>
    "tpu.trace_stop"() : () -> ()
    %49 = math.exp %48 : vector<2x8x8xf32>
    %50 = vector.shape_cast %37 : vector<8x8xf32> to vector<1x8x8xf32>
    %51 = vector.broadcast %50 : vector<1x8x8xf32> to vector<2x8x8xf32>
    %52 = arith.mulf %49, %51 : vector<2x8x8xf32>
    %53 = vector.extract_strided_slice %48 {offsets = [0, 0, 0], sizes = [2, 8, 1], strides = [1, 1, 1]} : vector<2x8x8xf32> to vector<2x8x1xf32>
    %54 = vector.extract_strided_slice %28 {offsets = [0, 0, 0], sizes = [2, 1, 1], strides = [1, 1, 1]} : vector<2x8x1xf32> to vector<2x1x1xf32>
    %55 = vector.broadcast %54 : vector<2x1x1xf32> to vector<2x8x1xf32>
    %56 = arith.addf %53, %55 : vector<2x8x1xf32>
    %57 = math.exp %56 : vector<2x8x1xf32>
    %c0_26 = arith.constant 0 : index
    %c0_27 = arith.constant 0 : index
    %c0_28 = arith.constant 0 : index
    %58 = vector.load %arg10[%c0_26, %c0_27, %c0_28] : memref<2x1x1xf32, #tpu.memory_space<vmem>>, vector<2x1x1xf32>
    %c0_29 = arith.constant 0 : index
    %c0_30 = arith.constant 0 : index
    %c0_31 = arith.constant 0 : index
    %59 = vector.load %arg11[%c0_29, %c0_30, %c0_31] : memref<2x1x32xf32, #tpu.memory_space<vmem>>, vector<2x1x32xf32>
    "tpu.trace_start"() <{level = 10 : i32, message = "btk,bkx->btx"}> : () -> ()
    %cst_32 = arith.constant dense<0.000000e+00> : vector<2x8x1xf32>
    %60 = tpu.matmul %52, %31, %cst_32 {dimension_numbers = #tpu.dot_dimension_numbers<[2], [1], [1], [2], [0, 0, 0, 1, 1, 2], [0], [0]>} : vector<2x8x8xf32>, vector<2x8x1xf32>, vector<2x8x1xf32> -> vector<2x8x1xf32>
    "tpu.trace_stop"() : () -> ()
    %61 = vector.broadcast %58 : vector<2x1x1xf32> to vector<2x8x1xf32>
    %62 = arith.mulf %57, %61 : vector<2x8x1xf32>
    %63 = arith.addf %60, %62 : vector<2x8x1xf32>
    "tpu.trace_start"() <{level = 10 : i32, message = "btk,bkd->btd"}> : () -> ()
    %cst_33 = arith.constant dense<0.000000e+00> : vector<2x8x32xf32>
    %64 = tpu.matmul %52, %32, %cst_33 {dimension_numbers = #tpu.dot_dimension_numbers<[2], [1], [1], [2], [0, 0, 0, 1, 1, 2], [0], [0]>} : vector<2x8x8xf32>, vector<2x8x32xf32>, vector<2x8x32xf32> -> vector<2x8x32xf32>
    "tpu.trace_stop"() : () -> ()
    %65 = vector.broadcast %57 : vector<2x8x1xf32> to vector<2x8x32xf32>
    %66 = vector.broadcast %59 : vector<2x1x32xf32> to vector<2x8x32xf32>
    %67 = arith.mulf %65, %66 : vector<2x8x32xf32>
    %68 = arith.addf %64, %67 : vector<2x8x32xf32>
    %cst_34 = arith.constant 9.99999993E-9 : f32
    %69 = vector.broadcast %cst_34 : f32 to vector<2x8x1xf32>
    %70 = arith.addf %63, %69 : vector<2x8x1xf32>
    %71 = tpu.reciprocal %70 {approx = true} : vector<2x8x1xf32> -> vector<2x8x1xf32>
    %72 = vector.broadcast %71 : vector<2x8x1xf32> to vector<2x8x32xf32>
    %73 = arith.mulf %68, %72 : vector<2x8x32xf32>
    %cst_35 = arith.constant dense<0.000000e+00> : vector<2x8xf32>
    %74 = vector.multi_reduction <add>, %73, %cst_35 [2] : vector<2x8x32xf32> to vector<2x8xf32>
    %75 = vector.shape_cast %74 : vector<2x8xf32> to vector<2x8x1xf32>
    %cst_36 = arith.constant 3.200000e+01 : f32
    %76 = vector.broadcast %cst_36 : f32 to vector<2x8x1xf32>
    %77 = arith.divf %75, %76 : vector<2x8x1xf32>
    %78 = vector.broadcast %77 : vector<2x8x1xf32> to vector<2x8x32xf32>
    %79 = arith.subf %73, %78 : vector<2x8x32xf32>
    %80 = arith.mulf %79, %79 : vector<2x8x32xf32>
    %cst_37 = arith.constant dense<0.000000e+00> : vector<2x8xf32>
    %81 = vector.multi_reduction <add>, %80, %cst_37 [2] : vector<2x8x32xf32> to vector<2x8xf32>
    %82 = vector.shape_cast %81 : vector<2x8xf32> to vector<2x8x1xf32>
    %cst_38 = arith.constant 3.200000e+01 : f32
    %83 = vector.broadcast %cst_38 : f32 to vector<2x8x1xf32>
    %84 = arith.divf %82, %83 : vector<2x8x1xf32>
    %cst_39 = arith.constant 9.99999974E-6 : f32
    %85 = vector.broadcast %cst_39 : f32 to vector<2x8x1xf32>
    %86 = arith.addf %84, %85 : vector<2x8x1xf32>
    %87 = math.rsqrt %86 : vector<2x8x1xf32>
    %88 = vector.broadcast %87 : vector<2x8x1xf32> to vector<2x8x32xf32>
    %89 = arith.mulf %79, %88 : vector<2x8x32xf32>
    %90 = vector.broadcast %7 : vector<1x1x32xf32> to vector<2x8x32xf32>
    %91 = arith.mulf %89, %90 : vector<2x8x32xf32>
    %92 = vector.broadcast %8 : vector<1x1x32xf32> to vector<2x8x32xf32>
    %93 = arith.addf %91, %92 : vector<2x8x32xf32>
    %c0_40 = arith.constant 0 : index
    %c0_41 = arith.constant 0 : index
    %c0_42 = arith.constant 0 : index
    %94 = vector.load %arg9[%c0_40, %c0_41, %c0_42] : memref<2x8x32xf32, #tpu.memory_space<vmem>>, vector<2x8x32xf32>
    tpu.vector_store %arg9[%c0_40, %c0_41, %c0_42], %93 {strides = array<i32>} : memref<2x8x32xf32, #tpu.memory_space<vmem>>, vector<2x8x32xf32>,
    %95 = vector.extract_strided_slice %63 {offsets = [0, 7, 0], sizes = [2, 1, 1], strides = [1, 1, 1]} : vector<2x8x1xf32> to vector<2x1x1xf32>
    %c0_43 = arith.constant 0 : index
    %c0_44 = arith.constant 0 : index
    %c0_45 = arith.constant 0 : index
    %96 = vector.load %arg10[%c0_43, %c0_44, %c0_45] : memref<2x1x1xf32, #tpu.memory_space<vmem>>, vector<2x1x1xf32>
    tpu.vector_store %arg10[%c0_43, %c0_44, %c0_45], %95 {strides = array<i32>} : memref<2x1x1xf32, #tpu.memory_space<vmem>>, vector<2x1x1xf32>,
    %97 = vector.extract_strided_slice %68 {offsets = [0, 7, 0], sizes = [2, 1, 32], strides = [1, 1, 1]} : vector<2x8x32xf32> to vector<2x1x32xf32>
    %c0_46 = arith.constant 0 : index
    %c0_47 = arith.constant 0 : index
    %c0_48 = arith.constant 0 : index
    %98 = vector.load %arg11[%c0_46, %c0_47, %c0_48] : memref<2x1x32xf32, #tpu.memory_space<vmem>>, vector<2x1x32xf32>
    tpu.vector_store %arg11[%c0_46, %c0_47, %c0_48], %97 {strides = array<i32>} : memref<2x1x32xf32, #tpu.memory_space<vmem>>, vector<2x1x32xf32>,
    return
  }
  func.func @transform_0(%arg0: i32, %arg1: i32) -> (i32, i32, i32) {
    %c0_i32 = arith.constant 0 : i32
    %c0_i32_0 = arith.constant 0 : i32
    return %arg0, %arg1, %c0_i32 : i32, i32, i32
  }
  func.func @transform_1(%arg0: i32, %arg1: i32) -> (i32, i32, i32) {
    %c0_i32 = arith.constant 0 : i32
    %c0_i32_0 = arith.constant 0 : i32
    return %arg0, %arg1, %c0_i32 : i32, i32, i32
  }
  func.func @transform_2(%arg0: i32, %arg1: i32) -> (i32, i32, i32) {
    %c0_i32 = arith.constant 0 : i32
    %c0_i32_0 = arith.constant 0 : i32
    return %arg0, %arg1, %c0_i32 : i32, i32, i32
  }
  func.func @transform_3(%arg0: i32, %arg1: i32) -> (i32, i32, i32) {
    %c0_i32 = arith.constant 0 : i32
    %c0_i32_0 = arith.constant 0 : i32
    %c0_i32_1 = arith.constant 0 : i32
    %c0_i32_2 = arith.constant 0 : i32
    return %c0_i32, %c0_i32_0, %c0_i32_1 : i32, i32, i32
  }
  func.func @transform_4(%arg0: i32, %arg1: i32) -> (i32, i32, i32) {
    %c0_i32 = arith.constant 0 : i32
    %c0_i32_0 = arith.constant 0 : i32
    %c0_i32_1 = arith.constant 0 : i32
    %c0_i32_2 = arith.constant 0 : i32
    return %c0_i32, %c0_i32_0, %c0_i32_1 : i32, i32, i32
  }
  func.func @transform_5(%arg0: i32, %arg1: i32) -> (i32, i32, i32) {
    %c0_i32 = arith.constant 0 : i32
    %c0_i32_0 = arith.constant 0 : i32
    %c0_i32_1 = arith.constant 0 : i32
    %c0_i32_2 = arith.constant 0 : i32
    return %c0_i32, %c0_i32_0, %c0_i32_1 : i32, i32, i32
  }
  func.func @transform_6(%arg0: i32, %arg1: i32) -> i32 {
    %c0_i32 = arith.constant 0 : i32
    %c0_i32_0 = arith.constant 0 : i32
    return %c0_i32 : i32
  }
  func.func @transform_7(%arg0: i32, %arg1: i32) -> (i32, i32, i32) {
    %c0_i32 = arith.constant 0 : i32
    %c0_i32_0 = arith.constant 0 : i32
    return %arg0, %arg1, %c0_i32 : i32, i32, i32
  }
}

</mosaic_0001>

<llo_original>
// kernel: tpu_custom_call.1
$region0: #{tpu_custom_call.1}
  #allocation0 [shape = 'u32[]', space=smem, size = 0x4, offset = 0x4, fixed_abs, tag = 'smem constant byte address 0x4 - core index']
  #allocation1 [shape = 'u32[144,128]{1,0:T(1,128)}', space=vmem, size = 0x12000, scoped, tag = 'internal scratch']
  #allocation2 [shape = 'f32[2,1,1]{2,1,0:T(1,128)}', space=vmem, size = 0x400, scoped, tag = 'scratch operand']
  #allocation3 [shape = 'f32[2,1,32]{2,1,0:T(1,128)}', space=vmem, size = 0x400, scoped, tag = 'scratch operand']
  #allocation4 [shape = 'f32[1]{0:T(128)S(6)}', space=smem, size = 0x200, scoped, tag = 'scoped memory for tpu_custom_call.1']
  %s0 = inlined_call_operand.hbm [shape: f32[2,8,32], index: 0, kind: input, shape index: {}]
  %s1 = inlined_call_operand.hbm [shape: f32[2,8,32], index: 1, kind: input, shape index: {}]
  %s2 = inlined_call_operand.hbm [shape: f32[2,8,32], index: 2, kind: input, shape index: {}]
  %s3 = inlined_call_operand.vmem [shape: f32[1,1,32], index: 3, kind: input, shape index: {}]
  %s4 = inlined_call_operand.vmem [shape: f32[1,1,32], index: 4, kind: input, shape index: {}]
  %s5 = inlined_call_operand.vmem [shape: f32[1,1,32], index: 5, kind: input, shape index: {}]
  %s6 = inlined_call_operand.<no memory space> [shape: f32[1], index: 6, kind: input, shape index: {}]
  %s7 = inlined_call_operand.hbm [shape: f32[2,8,32], index: 7, kind: output, shape index: {}]
  %s8 = sld [smem:[#allocation0]]
  $region54: #{tpu_custom_call.1} parent=0
    _
  %s10 = ssub.s32 1, %s8
  %s11 = scalar_select 0, %s10, %s8
  %12 = sst [smem:[#allocation4]] %s6
  $region1: #{tpu_custom_call.1} parent=0
    #allocation5 [shape = 'u8[8192]{0}', space=vmem, size = 0x2000, scoped, tag = 'input window, operand 0, single buffered']
    #allocation6 [shape = 's32[1]{0}', space=sflag, size = 0x4, scoped, tag = 'scoped memory for tpu_custom_call.1']
    #allocation7 [shape = 's32[1]{0}', space=sflag, size = 0x4, scoped, tag = 'scoped memory for tpu_custom_call.1']
    #allocation8 [shape = 'u8[8192]{0}', space=vmem, size = 0x2000, scoped, tag = 'input window, operand 1, single buffered']
    #allocation9 [shape = 's32[1]{0}', space=sflag, size = 0x4, scoped, tag = 'scoped memory for tpu_custom_call.1']
    #allocation10 [shape = 'u8[8192]{0}', space=vmem, size = 0x2000, scoped, tag = 'input window, operand 2, single buffered']
    #allocation11 [shape = 'u8[8192]{0}', space=vmem, size = 0x2000, scoped, tag = 'output window, operand 0, single buffered']
    %13 = vsyncpa [#allocation6], 0
    %14 = vsyncpa [#allocation9], 0
    %15 = vsyncpa [#allocation7], 0
    // Predicated region
    $region2: #{tpu_custom_call.1} parent=1 // pred_check
      _
    $region3: #{tpu_custom_call.1} parent=1 // pred_check_branch
      %17 = sbr.rel (0) target = $region5
    $region4: #{tpu_custom_call.1} parent=1 // pred_region
      %s19 = ssub.s32 256, 256
      %20 = vsyncadd [#allocation6], %s19
      %s21 = sshll.u32 [#allocation5], 4
      %s22 = int_to_ptr.vmem [resolvable:$true] %s21
      %27 = dma.hbm_to_vmem [thread:$0]  %s0, 256, %s22, [#allocation6], 128, 128, 8
    $region5: #{tpu_custom_call.1} parent=1 // pred_fallthru
      _
    // Predicated region
    $region6: #{tpu_custom_call.1} parent=1 // pred_check
      _
    $region7: #{tpu_custom_call.1} parent=1 // pred_check_branch
      %29 = sbr.rel (0) target = $region9
    $region8: #{tpu_custom_call.1} parent=1 // pred_region
      %s31 = ssub.s32 256, 256
      %32 = vsyncadd [#allocation9], %s31
      %s33 = sshll.u32 [#allocation8], 4
      %s34 = int_to_ptr.vmem [resolvable:$true] %s33
      %39 = dma.hbm_to_vmem [thread:$0]  %s1, 256, %s34, [#allocation9], 128, 128, 8
    $region9: #{tpu_custom_call.1} parent=1 // pred_fallthru
      _
    // Predicated region
    $region10: #{tpu_custom_call.1} parent=1 // pred_check
      _
    $region11: #{tpu_custom_call.1} parent=1 // pred_check_branch
      %41 = sbr.rel (0) target = $region13
    $region12: #{tpu_custom_call.1} parent=1 // pred_region
      %s43 = ssub.s32 256, 256
      %44 = vsyncadd [#allocation9], %s43
      %s45 = sshll.u32 [#allocation10], 4
      %s46 = int_to_ptr.vmem [resolvable:$true] %s45
      %51 = dma.hbm_to_vmem [thread:$0]  %s2, 256, %s46, [#allocation9], 128, 128, 8
    $region13: #{tpu_custom_call.1} parent=1 // pred_fallthru
      _
    // Predicated region
    $region14: #{tpu_custom_call.1} parent=1 // pred_check
      _
    $region15: #{tpu_custom_call.1} parent=1 // pred_check_branch
      %53 = sbr.rel (0) target = $region17
    $region16: #{tpu_custom_call.1} parent=1 // pred_region
      _
    $region17: #{tpu_custom_call.1} parent=1 // pred_fallthru
      _
    // Predicated region
    $region18: #{tpu_custom_call.1} parent=1 // pred_check
      _
    $region19: #{tpu_custom_call.1} parent=1 // pred_check_branch
      %55 = sbr.rel (0) target = $region21
    $region20: #{tpu_custom_call.1} parent=1 // pred_region
      _
    $region21: #{tpu_custom_call.1} parent=1 // pred_fallthru
      _
    // Predicated region
    $region22: #{tpu_custom_call.1} parent=1 // pred_check
      _
    $region23: #{tpu_custom_call.1} parent=1 // pred_check_branch
      %57 = sbr.rel (0) target = $region25
    $region24: #{tpu_custom_call.1} parent=1 // pred_region
      _
    $region25: #{tpu_custom_call.1} parent=1 // pred_fallthru
      _
    // Predicated region
    $region26: #{tpu_custom_call.1} parent=1 // pred_check
      _
    $region27: #{tpu_custom_call.1} parent=1 // pred_check_branch
      %59 = sbr.rel (0) target = $region29
    $region28: #{tpu_custom_call.1} parent=1 // pred_region
      _
    $region29: #{tpu_custom_call.1} parent=1 // pred_fallthru
      _
    // Predicated region
    $region30: #{tpu_custom_call.1} parent=1 // pred_check
      _
    $region31: #{tpu_custom_call.1} parent=1 // pred_check_branch
      %61 = sbr.rel (0) target = $region33
    $region32: #{tpu_custom_call.1} parent=1 // pred_region
      %62 = dma.done [#allocation6], 256
    $region33: #{tpu_custom_call.1} parent=1 // pred_fallthru
      _
    // Predicated region
    $region34: #{tpu_custom_call.1} parent=1 // pred_check
      _
    $region35: #{tpu_custom_call.1} parent=1 // pred_check_branch
      %64 = sbr.rel (0) target = $region37
    $region36: #{tpu_custom_call.1} parent=1 // pred_region
      %65 = dma.done [#allocation9], 256
    $region37: #{tpu_custom_call.1} parent=1 // pred_fallthru
      _
    // Predicated region
    $region38: #{tpu_custom_call.1} parent=1 // pred_check
      _
    $region39: #{tpu_custom_call.1} parent=1 // pred_check_branch
      %67 = sbr.rel (0) target = $region41
    $region40: #{tpu_custom_call.1} parent=1 // pred_region
      %68 = dma.done [#allocation9], 256
    $region41: #{tpu_custom_call.1} parent=1 // pred_fallthru
      _
    %p69 = scmp.eq.s32.totalorder 0, 0
    // Predicated region
    $region42: #{tpu_custom_call.1} parent=1 // pred_check
      %p70 = pneg %p69
    $region43: #{tpu_custom_call.1} parent=1 // pred_check_branch
      %72 = sbr.rel (%p70) target = $region45
    $region44: #{tpu_custom_call.1} parent=1 // pred_region
      %vm73 = vcmask 0
      %74 = vst.msk [vmem:[#allocation2] sm:$0x1] %vm73, 0.0
      %75 = vst.msk [vmem:[#allocation2 + $0x1] sm:$0x1] %vm73, 0.0
      %vm76 = vcmask 253952
      %77 = vst.msk [vmem:[#allocation3] sm:$0x1] %vm76, 0.0
      %78 = vst.msk [vmem:[#allocation3 + $0x1] sm:$0x1] %vm76, 0.0
    $region45: #{tpu_custom_call.1} parent=1 // pred_fallthru
      _
    %v79 = vld [vmem:[#allocation5] sm:$0xff]
    %v80 = vld [vmem:[#allocation5 + $0x8] sm:$0xff]
    %v81 = vld [vmem:[#allocation8] sm:$0xff]
    %v82 = vld [vmem:[#allocation8 + $0x8] sm:$0xff]
    %v83 = vld [vmem:[#allocation10] sm:$0xff]
    %v84 = vld [vmem:[#allocation10 + $0x8] sm:$0xff]
    %v85 = vld [vmem:[%s3] sm:$0x1]
    %v86 = vld [vmem:[%s4] sm:$0x1]
    %v87 = vld [vmem:[%s5] sm:$0x1]
    %s88 = sld [smem:[#allocation4]]
    %v90 = vlaneseq
    %v91 = vshrl.u32 %v90, 7
    %v92 = vsub.s32 0, %v91
    %v93 = vrot.slane %v85, %v92
    %v95 = vmul.f32 %v83, %v93
    %v96 = vmul.f32 %v84, %v93
    %vm97 = vcmask 261120
    %v98 = vsel %vm97, %v95, 0.0
    %99 = vadd.xlane.f32.xlu0 %v98
    %v100 = vpop.xlane.xlu0 %99
    %v101 = vsel %vm97, %v96, 0.0
    %102 = vadd.xlane.f32.xlu0 %v101
    %v103 = vpop.xlane.xlu0 %102
    %v104 = vstv %s88
    %v105 = vadd.f32 %v100, %v104
    %v106 = vadd.f32 %v103, %v104
    %v107 = vsub.f32 0.0, %v105
    %v108 = vsub.f32 0.0, %v106
    %vm109 = vcmp.gt.f32.partialorder %v107, 20.0
    %vm110 = vcmp.gt.f32.partialorder %v108, 20.0
    %v111 = vmin.f32 %v107, 20.0
    %v112 = vmin.f32 %v108, 20.0
    %v113 = vmul.f32 %v111, 1.442695
    %v114 = vpow.pop %v113
    %v115 = vmul.f32 %v112, 1.442695
    %v116 = vpow.pop %v115
    %v117 = vadd.f32 %v114, 1.0
    %v118 = vadd.f32 %v116, 1.0
    %v119 = vlog2.pop %v117
    %v120 = vmul.f32 %v119, 0.6931472
    %v121 = vlog2.pop %v118
    %v122 = vmul.f32 %v121, 0.6931472
    %v123 = vsel %vm109, %v107, %v120
    %v124 = vsel %vm110, %v108, %v122
    %v125 = vsub.f32 0.0, %v123
    %v126 = vsub.f32 0.0, %v124
    %v127 = vmul.f32 %v79, 1.442695
    %v128 = vpow.pop %v127
    %v129 = vmul.f32 %v80, 1.442695
    %v130 = vpow.pop %v129
    %v131 = vsel %vm97, %v128, 0.0
    %132 = vadd.xlane.f32.xlu0 %v131
    %v133 = vpop.xlane.xlu0 %132
    %v134 = vsel %vm97, %v130, 0.0
    %135 = vadd.xlane.f32.xlu0 %v134
    %v136 = vpop.xlane.xlu0 %135
    %v137 = vmul.f32 %v128, %v81
    %v138 = vmul.f32 %v130, %v82
    %v139 = vlaneseq
    %v140 = vshrl.u32 %v139, 7
    %v141 = vlaneseq
    %v142 = vand.u32 %v141, 127
    %vm143 = vcmp.le.s32.totalorder %v142, %v140
    %v144 = vsel %vm143, 1, 0
    %v145 = vcvt.s32.f32 %v144
    %vm146 = vcmp.gt.s32.totalorder %v140, %v142
    %v147 = vsel %vm146, 1, 0
    %v148 = vcvt.s32.f32 %v147
    %v149 = vmul.f32 %v125, %v148
    %v150 = vmul.f32 %v126, %v148
    %vm151 = vcmask 64512
    %v153 = vsel %vm151, %v145, 0
    %155 = vmatprep.subr.mxu0 0.0
    %156 = vmatpush1.msra.mxu0 0.0
    %157 = vmatprep.subr.mxu0 0.0
    %158 = vmatpush1.msra.mxu0 0.0
    %159 = vmatprep.subr.mxu0 0.0
    %160 = vmatpush1.msra.mxu0 0.0
    %161 = vmatprep.subr.mxu0 0.0
    %162 = vmatpush1.msra.mxu0 0.0
    %163 = vmatprep.subr.mxu0 0.0
    %164 = vmatpush1.msra.mxu0 0.0
    %165 = vmatprep.subr.mxu0 0.0
    %166 = vmatpush1.msra.mxu0 0.0
    %167 = vmatprep.subr.mxu0 0.0
    %168 = vmatpush1.msra.mxu0 0.0
    %169 = vmatprep.subr.mxu0 0.0
    %170 = vmatpush1.msra.mxu0 0.0
    %171 = vmatprep.subr.mxu0 0.0
    %172 = vmatpush1.msra.mxu0 0.0
    %173 = vmatprep.subr.mxu0 0.0
    %174 = vmatpush1.msra.mxu0 0.0
    %175 = vmatprep.subr.mxu0 0.0
    %176 = vmatpush1.msra.mxu0 0.0
    %177 = vmatprep.subr.mxu0 0.0
    %178 = vmatpush1.msra.mxu0 0.0
    %179 = vmatprep.subr.mxu0 0.0
    %180 = vmatpush1.msra.mxu0 0.0
    %181 = vmatprep.subr.mxu0 0.0
    %182 = vmatpush1.msra.mxu0 0.0
    %183 = vmatprep.subr.mxu0 0.0
    %184 = vmatpush1.msra.mxu0 0.0
    %185 = vmatprep.subr.mxu0 0.0
    %186 = vmatpush1.msra.mxu0 %v149
    %187 = vmatprep.subr.mxu0 0.0
    %188 = vmatpush2.msra.mxu0 0.0
    %189 = vmatprep.subr.mxu0 0.0
    %190 = vmatpush2.msra.mxu0 0.0
    %191 = vmatprep.subr.mxu0 0.0
    %192 = vmatpush2.msra.mxu0 0.0
    %193 = vmatprep.subr.mxu0 0.0
    %194 = vmatpush2.msra.mxu0 0.0
    %195 = vmatprep.subr.mxu0 0.0
    %196 = vmatpush2.msra.mxu0 0.0
    %197 = vmatprep.subr.mxu0 0.0
    %198 = vmatpush2.msra.mxu0 0.0
    %199 = vmatprep.subr.mxu0 0.0
    %200 = vmatpush2.msra.mxu0 0.0
    %201 = vmatprep.subr.mxu0 0.0
    %202 = vmatpush2.msra.mxu0 0.0
    %203 = vmatprep.subr.mxu0 0.0
    %204 = vmatpush2.msra.mxu0 0.0
    %205 = vmatprep.subr.mxu0 0.0
    %206 = vmatpush2.msra.mxu0 0.0
    %207 = vmatprep.subr.mxu0 0.0
    %208 = vmatpush2.msra.mxu0 0.0
    %209 = vmatprep.subr.mxu0 0.0
    %210 = vmatpush2.msra.mxu0 0.0
    %211 = vmatprep.subr.mxu0 0.0
    %212 = vmatpush2.msra.mxu0 0.0
    %213 = vmatprep.subr.mxu0 0.0
    %214 = vmatpush2.msra.mxu0 0.0
    %215 = vmatprep.subr.mxu0 0.0
    %216 = vmatpush2.msra.mxu0 0.0
    %217 = vmatprep.subr.mxu0 0.0
    %218 = vmatpush2.msra.mxu0 0.0
    %219 = vmatprep.mubr.f32.mxu0 0.0
    %220 = vmatmul.mubr.f32.gmra.mxu0 %v153
    %v221 = vpop.f32.mrf.mxu0
    %v222 = vadd.f32 0.0, %v221
    %v223 = vpop.f32.mrf.mxu0
    %224 = vdwg.mxu0
    %225 = vmatprep.subr.mxu0 0.0
    %226 = vmatpush1.msra.mxu0 0.0
    %227 = vmatprep.subr.mxu0 0.0
    %228 = vmatpush1.msra.mxu0 0.0
    %229 = vmatprep.subr.mxu0 0.0
    %230 = vmatpush1.msra.mxu0 0.0
    %231 = vmatprep.subr.mxu0 0.0
    %232 = vmatpush1.msra.mxu0 0.0
    %233 = vmatprep.subr.mxu0 0.0
    %234 = vmatpush1.msra.mxu0 0.0
    %235 = vmatprep.subr.mxu0 0.0
    %236 = vmatpush1.msra.mxu0 0.0
    %237 = vmatprep.subr.mxu0 0.0
    %238 = vmatpush1.msra.mxu0 0.0
    %239 = vmatprep.subr.mxu0 0.0
    %240 = vmatpush1.msra.mxu0 0.0
    %241 = vmatprep.subr.mxu0 0.0
    %242 = vmatpush1.msra.mxu0 0.0
    %243 = vmatprep.subr.mxu0 0.0
    %244 = vmatpush1.msra.mxu0 0.0
    %245 = vmatprep.subr.mxu0 0.0
    %246 = vmatpush1.msra.mxu0 0.0
    %247 = vmatprep.subr.mxu0 0.0
    %248 = vmatpush1.msra.mxu0 0.0
    %249 = vmatprep.subr.mxu0 0.0
    %250 = vmatpush1.msra.mxu0 0.0
    %251 = vmatprep.subr.mxu0 0.0
    %252 = vmatpush1.msra.mxu0 0.0
    %253 = vmatprep.subr.mxu0 0.0
    %254 = vmatpush1.msra.mxu0 0.0
    %255 = vmatprep.subr.mxu0 0.0
    %256 = vmatpush1.msra.mxu0 %v150
    %257 = vmatprep.subr.mxu0 0.0
    %258 = vmatpush2.msra.mxu0 0.0
    %259 = vmatprep.subr.mxu0 0.0
    %260 = vmatpush2.msra.mxu0 0.0
    %261 = vmatprep.subr.mxu0 0.0
    %262 = vmatpush2.msra.mxu0 0.0
    %263 = vmatprep.subr.mxu0 0.0
    %264 = vmatpush2.msra.mxu0 0.0
    %265 = vmatprep.subr.mxu0 0.0
    %266 = vmatpush2.msra.mxu0 0.0
    %267 = vmatprep.subr.mxu0 0.0
    %268 = vmatpush2.msra.mxu0 0.0
    %269 = vmatprep.subr.mxu0 0.0
    %270 = vmatpush2.msra.mxu0 0.0
    %271 = vmatprep.subr.mxu0 0.0
    %272 = vmatpush2.msra.mxu0 0.0
    %273 = vmatprep.subr.mxu0 0.0
    %274 = vmatpush2.msra.mxu0 0.0
    %275 = vmatprep.subr.mxu0 0.0
    %276 = vmatpush2.msra.mxu0 0.0
    %277 = vmatprep.subr.mxu0 0.0
    %278 = vmatpush2.msra.mxu0 0.0
    %279 = vmatprep.subr.mxu0 0.0
    %280 = vmatpush2.msra.mxu0 0.0
    %281 = vmatprep.subr.mxu0 0.0
    %282 = vmatpush2.msra.mxu0 0.0
    %283 = vmatprep.subr.mxu0 0.0
    %284 = vmatpush2.msra.mxu0 0.0
    %285 = vmatprep.subr.mxu0 0.0
    %286 = vmatpush2.msra.mxu0 0.0
    %287 = vmatprep.subr.mxu0 0.0
    %288 = vmatpush2.msra.mxu0 0.0
    %289 = vmatprep.mubr.f32.mxu0 0.0
    %290 = vmatmul.mubr.f32.gmra.mxu0 %v153
    %v291 = vpop.f32.mrf.mxu0
    %v292 = vadd.f32 0.0, %v291
    %v293 = vpop.f32.mrf.mxu0
    %294 = vdwg.mxu0
    %v295 = vmul.f32 %v222, 1.442695
    %v296 = vpow.pop %v295
    %v297 = vmul.f32 %v292, 1.442695
    %v298 = vpow.pop %v297
    %v299 = vmul.f32 %v296, %v145
    %v300 = vmul.f32 %v298, %v145
    %v301 = vlaneseq
    %v302 = vshrl.u32 %v301, 7
    %v303 = vsub.s32 0, %v302
    %v304 = vrot.slane %v125, %v303
    %v305 = vlaneseq
    %v306 = vshrl.u32 %v305, 7
    %v307 = vsub.s32 0, %v306
    %v308 = vrot.slane %v126, %v307
    %v309 = vadd.f32 %v222, %v304
    %v310 = vadd.f32 %v292, %v308
    %v311 = vmul.f32 %v309, 1.442695
    %v312 = vpow.pop %v311
    %v313 = vmul.f32 %v310, 1.442695
    %v314 = vpow.pop %v313
    %v315 = vld [vmem:[#allocation2] sm:$0x1]
    %v316 = vld [vmem:[#allocation2 + $0x1] sm:$0x1]
    %v317 = vld [vmem:[#allocation3] sm:$0x1]
    %v318 = vld [vmem:[#allocation3 + $0x1] sm:$0x1]
    %v321 = vlaneseq
    %v322 = vshrl.u32 %v321, 7
    %v323 = vsub.s32 0, %v322
    %v324 = vrot.slane %v315, %v323
    %v325 = vlaneseq
    %v326 = vshrl.u32 %v325, 7
    %v327 = vsub.s32 0, %v326
    %v328 = vrot.slane %v316, %v327
    %v331 = vmul.f32 %v312, %v324
    %v332 = vmul.f32 %v314, %v328
    %v334 = vsel %vm151, %v299, 0
    %336 = vmatprep.subr.mxu0 0.0
    %337 = vmatpush1.msra.mxu0 0.0
    %338 = vmatprep.subr.mxu0 0.0
    %339 = vmatpush1.msra.mxu0 0.0
    %340 = vmatprep.subr.mxu0 0.0
    %341 = vmatpush1.msra.mxu0 0.0
    %342 = vmatprep.subr.mxu0 0.0
    %343 = vmatpush1.msra.mxu0 0.0
    %344 = vmatprep.subr.mxu0 0.0
    %345 = vmatpush1.msra.mxu0 0.0
    %346 = vmatprep.subr.mxu0 0.0
    %347 = vmatpush1.msra.mxu0 0.0
    %348 = vmatprep.subr.mxu0 0.0
    %349 = vmatpush1.msra.mxu0 0.0
    %350 = vmatprep.subr.mxu0 0.0
    %351 = vmatpush1.msra.mxu0 0.0
    %352 = vmatprep.subr.mxu0 0.0
    %353 = vmatpush1.msra.mxu0 0.0
    %354 = vmatprep.subr.mxu0 0.0
    %355 = vmatpush1.msra.mxu0 0.0
    %356 = vmatprep.subr.mxu0 0.0
    %357 = vmatpush1.msra.mxu0 0.0
    %358 = vmatprep.subr.mxu0 0.0
    %359 = vmatpush1.msra.mxu0 0.0
    %360 = vmatprep.subr.mxu0 0.0
    %361 = vmatpush1.msra.mxu0 0.0
    %362 = vmatprep.subr.mxu0 0.0
    %363 = vmatpush1.msra.mxu0 0.0
    %364 = vmatprep.subr.mxu0 0.0
    %365 = vmatpush1.msra.mxu0 0.0
    %366 = vmatprep.subr.mxu0 0.0
    %367 = vmatpush1.msra.mxu0 %v133
    %368 = vmatprep.subr.mxu0 0.0
    %369 = vmatpush2.msra.mxu0 0.0
    %370 = vmatprep.subr.mxu0 0.0
    %371 = vmatpush2.msra.mxu0 0.0
    %372 = vmatprep.subr.mxu0 0.0
    %373 = vmatpush2.msra.mxu0 0.0
    %374 = vmatprep.subr.mxu0 0.0
    %375 = vmatpush2.msra.mxu0 0.0
    %376 = vmatprep.subr.mxu0 0.0
    %377 = vmatpush2.msra.mxu0 0.0
    %378 = vmatprep.subr.mxu0 0.0
    %379 = vmatpush2.msra.mxu0 0.0
    %380 = vmatprep.subr.mxu0 0.0
    %381 = vmatpush2.msra.mxu0 0.0
    %382 = vmatprep.subr.mxu0 0.0
    %383 = vmatpush2.msra.mxu0 0.0
    %384 = vmatprep.subr.mxu0 0.0
    %385 = vmatpush2.msra.mxu0 0.0
    %386 = vmatprep.subr.mxu0 0.0
    %387 = vmatpush2.msra.mxu0 0.0
    %388 = vmatprep.subr.mxu0 0.0
    %389 = vmatpush2.msra.mxu0 0.0
    %390 = vmatprep.subr.mxu0 0.0
    %391 = vmatpush2.msra.mxu0 0.0
    %392 = vmatprep.subr.mxu0 0.0
    %393 = vmatpush2.msra.mxu0 0.0
    %394 = vmatprep.subr.mxu0 0.0
    %395 = vmatpush2.msra.mxu0 0.0
    %396 = vmatprep.subr.mxu0 0.0
    %397 = vmatpush2.msra.mxu0 0.0
    %398 = vmatprep.subr.mxu0 0.0
    %399 = vmatpush2.msra.mxu0 0.0
    %400 = vmatprep.mubr.f32.mxu0 0.0
    %401 = vmatmul.mubr.f32.gmra.mxu0 %v334
    %v402 = vpop.f32.mrf.mxu0
    %v403 = vadd.f32 %v331, %v402
    %v404 = vpop.f32.mrf.mxu0
    %405 = vdwg.mxu0
    %v407 = vsel %vm151, %v300, 0
    %409 = vmatprep.subr.mxu0 0.0
    %410 = vmatpush1.msra.mxu0 0.0
    %411 = vmatprep.subr.mxu0 0.0
    %412 = vmatpush1.msra.mxu0 0.0
    %413 = vmatprep.subr.mxu0 0.0
    %414 = vmatpush1.msra.mxu0 0.0
    %415 = vmatprep.subr.mxu0 0.0
    %416 = vmatpush1.msra.mxu0 0.0
    %417 = vmatprep.subr.mxu0 0.0
    %418 = vmatpush1.msra.mxu0 0.0
    %419 = vmatprep.subr.mxu0 0.0
    %420 = vmatpush1.msra.mxu0 0.0
    %421 = vmatprep.subr.mxu0 0.0
    %422 = vmatpush1.msra.mxu0 0.0
    %423 = vmatprep.subr.mxu0 0.0
    %424 = vmatpush1.msra.mxu0 0.0
    %425 = vmatprep.subr.mxu0 0.0
    %426 = vmatpush1.msra.mxu0 0.0
    %427 = vmatprep.subr.mxu0 0.0
    %428 = vmatpush1.msra.mxu0 0.0
    %429 = vmatprep.subr.mxu0 0.0
    %430 = vmatpush1.msra.mxu0 0.0
    %431 = vmatprep.subr.mxu0 0.0
    %432 = vmatpush1.msra.mxu0 0.0
    %433 = vmatprep.subr.mxu0 0.0
    %434 = vmatpush1.msra.mxu0 0.0
    %435 = vmatprep.subr.mxu0 0.0
    %436 = vmatpush1.msra.mxu0 0.0
    %437 = vmatprep.subr.mxu0 0.0
    %438 = vmatpush1.msra.mxu0 0.0
    %439 = vmatprep.subr.mxu0 0.0
    %440 = vmatpush1.msra.mxu0 %v136
    %441 = vmatprep.subr.mxu0 0.0
    %442 = vmatpush2.msra.mxu0 0.0
    %443 = vmatprep.subr.mxu0 0.0
    %444 = vmatpush2.msra.mxu0 0.0
    %445 = vmatprep.subr.mxu0 0.0
    %446 = vmatpush2.msra.mxu0 0.0
    %447 = vmatprep.subr.mxu0 0.0
    %448 = vmatpush2.msra.mxu0 0.0
    %449 = vmatprep.subr.mxu0 0.0
    %450 = vmatpush2.msra.mxu0 0.0
    %451 = vmatprep.subr.mxu0 0.0
    %452 = vmatpush2.msra.mxu0 0.0
    %453 = vmatprep.subr.mxu0 0.0
    %454 = vmatpush2.msra.mxu0 0.0
    %455 = vmatprep.subr.mxu0 0.0
    %456 = vmatpush2.msra.mxu0 0.0
    %457 = vmatprep.subr.mxu0 0.0
    %458 = vmatpush2.msra.mxu0 0.0
    %459 = vmatprep.subr.mxu0 0.0
    %460 = vmatpush2.msra.mxu0 0.0
    %461 = vmatprep.subr.mxu0 0.0
    %462 = vmatpush2.msra.mxu0 0.0
    %463 = vmatprep.subr.mxu0 0.0
    %464 = vmatpush2.msra.mxu0 0.0
    %465 = vmatprep.subr.mxu0 0.0
    %466 = vmatpush2.msra.mxu0 0.0
    %467 = vmatprep.subr.mxu0 0.0
    %468 = vmatpush2.msra.mxu0 0.0
    %469 = vmatprep.subr.mxu0 0.0
    %470 = vmatpush2.msra.mxu0 0.0
    %471 = vmatprep.subr.mxu0 0.0
    %472 = vmatpush2.msra.mxu0 0.0
    %473 = vmatprep.mubr.f32.mxu0 0.0
    %474 = vmatmul.mubr.f32.gmra.mxu0 %v407
    %v475 = vpop.f32.mrf.mxu0
    %v476 = vadd.f32 %v332, %v475
    %v477 = vpop.f32.mrf.mxu0
    %478 = vdwg.mxu0
    %480 = vset.pattern.permute.xlu0 0
    %481 = vperm.xlu0 %480, %v312
    %v482 = vpop.permute.xlu0 %481
    %485 = vset.pattern.permute.xlu0 0
    %486 = vperm.xlu0 %485, %v314
    %v487 = vpop.permute.xlu0 %486
    %v491 = vlaneseq
    %v492 = vshrl.u32 %v491, 7
    %v493 = vsub.s32 0, %v492
    %v494 = vrot.slane %v317, %v493
    %v495 = vlaneseq
    %v496 = vshrl.u32 %v495, 7
    %v497 = vsub.s32 0, %v496
    %v498 = vrot.slane %v318, %v497
    %v501 = vmul.f32 %v482, %v494
    %v502 = vmul.f32 %v487, %v498
    %503 = vmatprep.subr.mxu0 0.0
    %504 = vmatpush1.msra.mxu0 0.0
    %505 = vmatprep.subr.mxu0 0.0
    %506 = vmatpush1.msra.mxu0 0.0
    %507 = vmatprep.subr.mxu0 0.0
    %508 = vmatpush1.msra.mxu0 0.0
    %509 = vmatprep.subr.mxu0 0.0
    %510 = vmatpush1.msra.mxu0 0.0
    %511 = vmatprep.subr.mxu0 0.0
    %512 = vmatpush1.msra.mxu0 0.0
    %513 = vmatprep.subr.mxu0 0.0
    %514 = vmatpush1.msra.mxu0 0.0
    %515 = vmatprep.subr.mxu0 0.0
    %516 = vmatpush1.msra.mxu0 0.0
    %517 = vmatprep.subr.mxu0 0.0
    %518 = vmatpush1.msra.mxu0 0.0
    %519 = vmatprep.subr.mxu0 0.0
    %520 = vmatpush1.msra.mxu0 0.0
    %521 = vmatprep.subr.mxu0 0.0
    %522 = vmatpush1.msra.mxu0 0.0
    %523 = vmatprep.subr.mxu0 0.0
    %524 = vmatpush1.msra.mxu0 0.0
    %525 = vmatprep.subr.mxu0 0.0
    %526 = vmatpush1.msra.mxu0 0.0
    %527 = vmatprep.subr.mxu0 0.0
    %528 = vmatpush1.msra.mxu0 0.0
    %529 = vmatprep.subr.mxu0 0.0
    %530 = vmatpush1.msra.mxu0 0.0
    %531 = vmatprep.subr.mxu0 0.0
    %532 = vmatpush1.msra.mxu0 0.0
    %533 = vmatprep.subr.mxu0 0.0
    %534 = vmatpush1.msra.mxu0 %v137
    %535 = vmatprep.subr.mxu0 0.0
    %536 = vmatpush2.msra.mxu0 0.0
    %537 = vmatprep.subr.mxu0 0.0
    %538 = vmatpush2.msra.mxu0 0.0
    %539 = vmatprep.subr.mxu0 0.0
    %540 = vmatpush2.msra.mxu0 0.0
    %541 = vmatprep.subr.mxu0 0.0
    %542 = vmatpush2.msra.mxu0 0.0
    %543 = vmatprep.subr.mxu0 0.0
    %544 = vmatpush2.msra.mxu0 0.0
    %545 = vmatprep.subr.mxu0 0.0
    %546 = vmatpush2.msra.mxu0 0.0
    %547 = vmatprep.subr.mxu0 0.0
    %548 = vmatpush2.msra.mxu0 0.0
    %549 = vmatprep.subr.mxu0 0.0
    %550 = vmatpush2.msra.mxu0 0.0
    %551 = vmatprep.subr.mxu0 0.0
    %552 = vmatpush2.msra.mxu0 0.0
    %553 = vmatprep.subr.mxu0 0.0
    %554 = vmatpush2.msra.mxu0 0.0
    %555 = vmatprep.subr.mxu0 0.0
    %556 = vmatpush2.msra.mxu0 0.0
    %557 = vmatprep.subr.mxu0 0.0
    %558 = vmatpush2.msra.mxu0 0.0
    %559 = vmatprep.subr.mxu0 0.0
    %560 = vmatpush2.msra.mxu0 0.0
    %561 = vmatprep.subr.mxu0 0.0
    %562 = vmatpush2.msra.mxu0 0.0
    %563 = vmatprep.subr.mxu0 0.0
    %564 = vmatpush2.msra.mxu0 0.0
    %565 = vmatprep.subr.mxu0 0.0
    %566 = vmatpush2.msra.mxu0 0.0
    %567 = vmatprep.mubr.f32.mxu0 0.0
    %568 = vmatmul.mubr.f32.gmra.mxu0 %v334
    %v569 = vpop.f32.mrf.mxu0
    %v570 = vadd.f32 %v501, %v569
    %v571 = vpop.f32.mrf.mxu0
    %572 = vdwg.mxu0
    %573 = vmatprep.subr.mxu0 0.0
    %574 = vmatpush1.msra.mxu0 0.0
    %575 = vmatprep.subr.mxu0 0.0
    %576 = vmatpush1.msra.mxu0 0.0
    %577 = vmatprep.subr.mxu0 0.0
    %578 = vmatpush1.msra.mxu0 0.0
    %579 = vmatprep.subr.mxu0 0.0
    %580 = vmatpush1.msra.mxu0 0.0
    %581 = vmatprep.subr.mxu0 0.0
    %582 = vmatpush1.msra.mxu0 0.0
    %583 = vmatprep.subr.mxu0 0.0
    %584 = vmatpush1.msra.mxu0 0.0
    %585 = vmatprep.subr.mxu0 0.0
    %586 = vmatpush1.msra.mxu0 0.0
    %587 = vmatprep.subr.mxu0 0.0
    %588 = vmatpush1.msra.mxu0 0.0
    %589 = vmatprep.subr.mxu0 0.0
    %590 = vmatpush1.msra.mxu0 0.0
    %591 = vmatprep.subr.mxu0 0.0
    %592 = vmatpush1.msra.mxu0 0.0
    %593 = vmatprep.subr.mxu0 0.0
    %594 = vmatpush1.msra.mxu0 0.0
    %595 = vmatprep.subr.mxu0 0.0
    %596 = vmatpush1.msra.mxu0 0.0
    %597 = vmatprep.subr.mxu0 0.0
    %598 = vmatpush1.msra.mxu0 0.0
    %599 = vmatprep.subr.mxu0 0.0
    %600 = vmatpush1.msra.mxu0 0.0
    %601 = vmatprep.subr.mxu0 0.0
    %602 = vmatpush1.msra.mxu0 0.0
    %603 = vmatprep.subr.mxu0 0.0
    %604 = vmatpush1.msra.mxu0 %v138
    %605 = vmatprep.subr.mxu0 0.0
    %606 = vmatpush2.msra.mxu0 0.0
    %607 = vmatprep.subr.mxu0 0.0
    %608 = vmatpush2.msra.mxu0 0.0
    %609 = vmatprep.subr.mxu0 0.0
    %610 = vmatpush2.msra.mxu0 0.0
    %611 = vmatprep.subr.mxu0 0.0
    %612 = vmatpush2.msra.mxu0 0.0
    %613 = vmatprep.subr.mxu0 0.0
    %614 = vmatpush2.msra.mxu0 0.0
    %615 = vmatprep.subr.mxu0 0.0
    %616 = vmatpush2.msra.mxu0 0.0
    %617 = vmatprep.subr.mxu0 0.0
    %618 = vmatpush2.msra.mxu0 0.0
    %619 = vmatprep.subr.mxu0 0.0
    %620 = vmatpush2.msra.mxu0 0.0
    %621 = vmatprep.subr.mxu0 0.0
    %622 = vmatpush2.msra.mxu0 0.0
    %623 = vmatprep.subr.mxu0 0.0
    %624 = vmatpush2.msra.mxu0 0.0
    %625 = vmatprep.subr.mxu0 0.0
    %626 = vmatpush2.msra.mxu0 0.0
    %627 = vmatprep.subr.mxu0 0.0
    %628 = vmatpush2.msra.mxu0 0.0
    %629 = vmatprep.subr.mxu0 0.0
    %630 = vmatpush2.msra.mxu0 0.0
    %631 = vmatprep.subr.mxu0 0.0
    %632 = vmatpush2.msra.mxu0 0.0
    %633 = vmatprep.subr.mxu0 0.0
    %634 = vmatpush2.msra.mxu0 0.0
    %635 = vmatprep.subr.mxu0 0.0
    %636 = vmatpush2.msra.mxu0 0.0
    %637 = vmatprep.mubr.f32.mxu0 0.0
    %638 = vmatmul.mubr.f32.gmra.mxu0 %v407
    %v639 = vpop.f32.mrf.mxu0
    %v640 = vadd.f32 %v502, %v639
    %v641 = vpop.f32.mrf.mxu0
    %642 = vdwg.mxu0
    %v643 = vadd.f32 %v403, 1e-08
    %v644 = vadd.f32 %v476, 1e-08
    %v645 = vrcp.pop %v643
    %v646 = vrcp.pop %v644
    %648 = vset.pattern.permute.xlu0 0
    %649 = vperm.xlu0 %648, %v645
    %v650 = vpop.permute.xlu0 %649
    %653 = vset.pattern.permute.xlu0 0
    %654 = vperm.xlu0 %653, %v646
    %v655 = vpop.permute.xlu0 %654
    %v657 = vmul.f32 %v570, %v650
    %v658 = vmul.f32 %v640, %v655
    %v659 = vsel %vm97, %v657, 0.0
    %660 = vadd.xlane.f32.xlu0 %v659
    %v661 = vpop.xlane.xlu0 %660
    %v662 = vsel %vm97, %v658, 0.0
    %663 = vadd.xlane.f32.xlu0 %v662
    %v664 = vpop.xlane.xlu0 %663
    %v665 = vrcp.pop 32.0
    %v666 = vmul.f32 %v661, %v665
    %v667 = vmul.f32 %v664, %v665
    %v668 = vsub.f32 %v657, %v666
    %v669 = vsub.f32 %v658, %v667
    %v670 = vmul.f32 %v668, %v668
    %v671 = vmul.f32 %v669, %v669
    %v672 = vsel %vm97, %v670, 0.0
    %673 = vadd.xlane.f32.xlu0 %v672
    %v674 = vpop.xlane.xlu0 %673
    %v675 = vsel %vm97, %v671, 0.0
    %676 = vadd.xlane.f32.xlu0 %v675
    %v677 = vpop.xlane.xlu0 %676
    %v678 = vmul.f32 %v674, %v665
    %v679 = vmul.f32 %v677, %v665
    %v680 = vadd.f32 %v678, 1e-05
    %v681 = vadd.f32 %v679, 1e-05
    %v682 = vrsqrt.pop %v680
    %v683 = vrsqrt.pop %v681
    %v684 = vmul.f32 %v668, %v682
    %v685 = vmul.f32 %v669, %v683
    %v687 = vlaneseq
    %v688 = vshrl.u32 %v687, 7
    %v689 = vsub.s32 0, %v688
    %v690 = vrot.slane %v86, %v689
    %v692 = vmul.f32 %v684, %v690
    %v693 = vmul.f32 %v685, %v690
    %v695 = vlaneseq
    %v696 = vshrl.u32 %v695, 7
    %v697 = vsub.s32 0, %v696
    %v698 = vrot.slane %v87, %v697
    %v700 = vadd.f32 %v692, %v698
    %v701 = vadd.f32 %v693, %v698
    %702 = vst.msk [vmem:[#allocation11] sm:$0xff] %vm97, %v700
    %703 = vst.msk [vmem:[#allocation11 + $0x8] sm:$0xff] %vm97, %v701
    %vm704 = vcmask 7175
    %705 = vst.msk [vmem:[#allocation2 - $0x7] sm:$0x80] %vm704, %v403
    %706 = vst.msk [vmem:[#allocation2 - $0x6] sm:$0x80] %vm704, %v476
    %vm707 = vcmask 261127
    %708 = vst.msk [vmem:[#allocation3 - $0x7] sm:$0x80] %vm707, %v570
    %709 = vst.msk [vmem:[#allocation3 - $0x6] sm:$0x80] %vm707, %v640
    // Predicated region
    $region46: #{tpu_custom_call.1} parent=1 // pred_check
      _
    $region47: #{tpu_custom_call.1} parent=1 // pred_check_branch
      %711 = sbr.rel (0) target = $region49
    $region48: #{tpu_custom_call.1} parent=1 // pred_region
      %s713 = ssub.s32 256, 256
      %714 = vsyncadd [#allocation7], %s713
      %s715 = sshll.u32 [#allocation11], 4
      %s716 = int_to_ptr.vmem [resolvable:$true] %s715
      %721 = dma.vmem_to_hbm [thread:$0]  %s716, 256, %s7, [#allocation7], 128, 128, 8
    $region49: #{tpu_custom_call.1} parent=1 // pred_fallthru
      _
    // Predicated region
    $region50: #{tpu_custom_call.1} parent=1 // pred_check
      _
    $region51: #{tpu_custom_call.1} parent=1 // pred_check_branch
      %723 = sbr.rel (0) target = $region53
    $region52: #{tpu_custom_call.1} parent=1 // pred_region
      %724 = dma.done [#allocation7], 256
    $region53: #{tpu_custom_call.1} parent=1 // pred_fallthru
      _
    %725 = vsyncpa [#allocation6], 1
    %726 = vsyncpa [#allocation9], 1
    %727 = vsyncpa [#allocation7], 1

</llo_original>
